<compile_context>
chip_gen: v7x
topology: tpu7x:2x2x1
jax: 0.10.0
libtpu: 0.0.40
codegen_flags: <defaults>
</compile_context>

<pallas_src>
import random

import numpy as np

import jax
import jax.numpy as jnp
from jax.experimental import pallas as pl
from jax.experimental.pallas import tpu as pltpu


# ------------------------------ helpers ----------------------------------- #
_M_ALIGN = 32      # int8 mask native sublane tile is (32, 128)
_LANE = 128


def _round_up(x, m):
    return ((x + m - 1) // m) * m


def _vmem_capacity_bytes():
    """Physical VMEM per TensorCore, generation-aware with safe fallbacks."""
    try:
        cap = getattr(pltpu.get_tpu_info(), "vmem_capacity_bytes", None)
        if cap:
            return int(cap)
    except Exception:
        pass
    try:
        kind = jax.devices()[0].device_kind.lower()
    except Exception:
        kind = ""
    if "v7" in kind or "7x" in kind:
        return 64 << 20            # v7x: 64 MiB per TensorCore
    return 128 << 20               # v5e / v6e: 128 MiB


def _vmem_limit_bytes():
    # ~96 MiB on v5e/v6e, ~48 MiB on v7x: leave 1/4 of physical VMEM free.
    return int((3 * _vmem_capacity_bytes()) // 4)


def _choose_tiles(M, K, D, budget_bytes):
    """Pick (tm, tk, Dp, single_k, emb_buffers).

    The feature dim is never tiled (single lane-dense slab of width Dp).
    Footprints assume: int8 mask (1 B), bf16 embeddings (2 B), f32 out (4 B).
    """
    Dp = _round_up(D, _LANE)
    MASK_B, EMB_B, OUT_B = 1, 2, 4

    # M tiling: minimize padding waste (tm ~= M / ceil(M/256)) and guarantee
    # >=2 grid steps on the "parallel" axis when M is big enough so both v7x
    # TensorCores get work.
    n_m = max(1, -(-M // 256))
    if M > _M_ALIGN:
        n_m = max(n_m, 2)
    tm = _round_up(-(-M // n_m), _M_ALIGN)

    Kp = _round_up(K, _LANE)

    def single_fp(n_emb_buf):
        return (2 * tm * Kp * MASK_B            # double-buffered int8 mask tile
                + n_emb_buf * Kp * Dp * EMB_B   # resident bf16 embedding panel
                + 2 * tm * Dp * OUT_B)          # double-buffered f32 out tile

    # Scratch-free single-K fast path (the common GraphSAGE case).
    if single_fp(2) <= budget_bytes:
        return tm, Kp, Dp, True, 2
    if hasattr(pl, "Buffered") and single_fp(1) <= budget_bytes:
        # Invariant RHS: second buffer is pure waste -> single-buffer it.
        return tm, Kp, Dp, True, 1

    # Multi-K path (accumulates into the resident f32 output block; no scratch).
    tk = min(Kp, 8192)

    def multi_fp(tm_, tk_):
        return (2 * tm_ * tk_ * MASK_B
                + 2 * tk_ * Dp * EMB_B
                + 2 * tm_ * Dp * OUT_B)

    while multi_fp(tm, tk) > budget_bytes and tk > _LANE:
        tk = max(_LANE, _round_up(tk // 2, _LANE))
    while multi_fp(tm, tk) > budget_bytes and tm > _M_ALIGN:
        tm = max(_M_ALIGN, _round_up(tm // 2, _M_ALIGN))
    return tm, tk, Dp, False, 2


# ----------------------------- Pallas kernels ------------------------------ #
def _mm_single_k_kernel(mask_ref, emb_ref, out_ref):
    # Whole K in one block: scratch-free, no init/finalize branches.
    # int8 {0,1} mask is cast to bf16 on the VPU (hides under the DMA).
    out_ref[...] = jnp.dot(
        mask_ref[...].astype(emb_ref.dtype), emb_ref[...],
        preferred_element_type=jnp.float32,
    )


def _mm_multi_k_kernel(mask_ref, emb_ref, out_ref):
    # General case: the output block index is constant over the (last,
    # "arbitrary") K axis, so out_ref stays resident in VMEM -> accumulate
    # into it directly (no scratch accumulator, no final copy).
    @pl.when(pl.program_id(1) == 0)
    def _():
        out_ref[...] = jnp.zeros_like(out_ref)

    out_ref[...] += jnp.dot(
        mask_ref[...].astype(emb_ref.dtype), emb_ref[...],
        preferred_element_type=jnp.float32,
    )


def pallas_mask_mm(mask_p, emb_p, tm, tk, emb_buffers, vmem_limit_bytes):
    """out = mask_p @ emb_p (f32 output). Inputs already padded/aligned.

    mask_p: (Mp, Kp) int8 {0,1};  emb_p: (Kp, Dp) bf16.
    """
    Mp, Kp = mask_p.shape
    Kp2, Dp = emb_p.shape
    assert Kp == Kp2 and Mp % tm == 0 and Kp % tk == 0 and Dp % _LANE == 0

    cost = pl.CostEstimate(
        flops=2 * Mp * Kp * Dp,
        bytes_accessed=(Mp * Kp * mask_p.dtype.itemsize
                        + Kp * Dp * emb_p.dtype.itemsize
                        + Mp * Dp * 4),
        transcendentals=0,
    )

    if Kp == tk:
        # Single K block: scratch-free kernel, 1-D grid over M only.
        if emb_buffers == 1:
            emb_spec = pl.BlockSpec((Kp, Dp), lambda i: (0, 0),
                                    pipeline_mode=pl.Buffered(1))
        else:
            emb_spec = pl.BlockSpec((Kp, Dp), lambda i: (0, 0))
        return pl.pallas_call(
            _mm_single_k_kernel,
            out_shape=jax.ShapeDtypeStruct((Mp, Dp), jnp.float32),
            grid_spec=pltpu.PrefetchScalarGridSpec(
                num_scalar_prefetch=0,
                grid=(Mp // tm,),
                in_specs=[
                    pl.BlockSpec((tm, Kp), lambda i: (i, 0)),
                    emb_spec,                              # resident RHS panel
                ],
                out_specs=pl.BlockSpec((tm, Dp), lambda i: (i, 0)),
            ),
            compiler_params=pltpu.CompilerParams(
                dimension_semantics=("parallel",),
                vmem_limit_bytes=vmem_limit_bytes,
            ),
            cost_estimate=cost,
        )(mask_p, emb_p)

    # Multiple K blocks: accumulate into the resident f32 output block.
    return pl.pallas_call(
        _mm_multi_k_kernel,
        out_shape=jax.ShapeDtypeStruct((Mp, Dp), jnp.float32),
        grid_spec=pltpu.PrefetchScalarGridSpec(
            num_scalar_prefetch=0,
            grid=(Mp // tm, Kp // tk),
            in_specs=[
                pl.BlockSpec((tm, tk), lambda i, k: (i, k)),
                pl.BlockSpec((tk, Dp), lambda i, k: (k, 0)),
            ],
            out_specs=pl.BlockSpec((tm, Dp), lambda i, k: (i, 0)),
        ),
        compiler_params=pltpu.CompilerParams(
            dimension_semantics=("parallel", "arbitrary"),
            vmem_limit_bytes=vmem_limit_bytes,
        ),
        cost_estimate=cost,
    )(mask_p, emb_p)


# --------------------------- SumAggregator glue ---------------------------- #
class SumAggregatorPallas:
    """JAX/Pallas port of GraphSAGE SumAggregator.

    `features` is the embedding table (array [num_total_nodes, feat_dim]);
    the torch lookup `features(LongTensor(ids))` becomes a row gather.
    """

    def __init__(self, features, gcn=False, compute_dtype=jnp.bfloat16):
        self.gcn = gcn
        self.compute_dtype = compute_dtype
        self.feat_dim = int(features.shape[1])
        self._Dp = _round_up(self.feat_dim, _LANE)
        n_rows = int(features.shape[0])
        # Pre-pad the table once (lane-aligned) in the compute dtype and append
        # one explicit all-zero row used for padded gather indices (avoids any
        # 0 * Inf = NaN hazard from reusing row 0).  The {0,1} mask is exact in
        # bf16; bf16 embeddings trade <0.5% rounding for 2x less HBM traffic
        # and native MXU rate.  Accumulation stays f32.
        table = jnp.zeros((n_rows + 1, self._Dp), dtype=compute_dtype)
        table = table.at[:n_rows, :self.feat_dim].set(
            jnp.asarray(features, dtype=compute_dtype))
        self._features_padded = table
        self._zero_row = n_rows

    def forward(self, nodes, to_neighs, num_sample=10):
        # ---- host-side Python sampling / set logic (same as torch module) ----
        # TODO(synk): neighbor sampling / set-union / dict construction is
        # inherently host-side Python; it stays outside the Pallas kernel.
        _set = set
        if num_sample is not None:
            _sample = random.sample
            samp_neighs = [
                _set(_sample(sorted(to_neigh), num_sample))
                if len(to_neigh) >= num_sample
                else to_neigh
                for to_neigh in to_neighs
            ]
        else:
            samp_neighs = to_neighs
        if self.gcn:
            samp_neighs = [
                set.union(samp_neigh, _set([nodes[i]]))
                for i, samp_neigh in enumerate(samp_neighs)
            ]
        unique_nodes_list = list(set.union(*samp_neighs))
        unique_nodes = {n: i for i, n in enumerate(unique_nodes_list)}

        M = len(samp_neighs)
        K = len(unique_nodes_list)
        D = self.feat_dim

        vmem_limit = _vmem_limit_bytes()
        budget = vmem_limit - (4 << 20)         # headroom for compiler scratch
        tm, tk, Dp, single_k, emb_buffers = _choose_tiles(M, K, D, budget)
        Mp = _round_up(M, tm)
        Kp = tk if single_k else _round_up(K, tk)

        # {0,1} mask written straight into a padded int8 host buffer
        # (halves HBM/DMA bytes vs bf16; cast to bf16 happens in-kernel).
        mask_np = np.zeros((Mp, Kp), dtype=np.int8)
        column_indices = [unique_nodes[n] for sn in samp_neighs for n in sn]
        row_indices = [i for i in range(len(samp_neighs))
                       for _ in range(len(samp_neighs[i]))]
        mask_np[row_indices, column_indices] = 1
        mask_p = jnp.asarray(mask_np)

        # Padded unique-id list -> gather yields a (Kp, Dp) operand directly.
        # Padding entries hit the explicit zero row of the table.
        idx_np = np.full((Kp,), self._zero_row, dtype=np.int32)
        idx_np[:K] = np.asarray(unique_nodes_list, dtype=np.int32)
        emb_p = jnp.take(self._features_padded, jnp.asarray(idx_np), axis=0)

        # Hot path in Pallas: to_feats = mask @ embed_matrix (f32 accumulate).
        out_p = pallas_mask_mm(mask_p, emb_p, tm, tk, emb_buffers, vmem_limit)
        return out_p[:M, :D]


# --------------------------------- demo ----------------------------------- #
if __name__ == "__main__":
    key = jax.random.PRNGKey(0)
    k_feat, k_mask, k_emb = jax.random.split(key, 3)

    num_total_nodes = 40
    feat_dim = 32
    num_nodes = 8
    num_sample = 10

    # Deterministic "embedding table" (stands in for nn.Embedding weights).
    features = jax.random.normal(k_feat, (num_total_nodes, feat_dim),
                                 dtype=jnp.float32)

    # Deterministic synthetic adjacency: node i neighbors a window of node ids.
    nodes = list(range(num_nodes))
    to_neighs = [
        set(((i * 3 + j * 7) % num_total_nodes) for j in range(12)) for i in nodes
    ]

    agg = SumAggregatorPallas(features, gcn=False)

    random.seed(0)
    to_feats = agg.forward(nodes, to_neighs, num_sample=num_sample)
    to_feats = jax.block_until_ready(to_feats)

    assert to_feats.shape == (num_nodes, feat_dim)
    assert to_feats.dtype == jnp.float32

    # Reference (pure numpy, f32) with identical sampling (reset the seed).
    random.seed(0)
    samp_neighs = [
        set(random.sample(sorted(tn), num_sample)) if len(tn) >= num_sample else tn
        for tn in to_neighs
    ]
    unique_nodes_list = list(set.union(*samp_neighs))
    unique_nodes = {n: i for i, n in enumerate(unique_nodes_list)}
    mask_ref = np.zeros((num_nodes, len(unique_nodes_list)), dtype=np.float32)
    cols = [unique_nodes[n] for sn in samp_neighs for n in sn]
    rows = [i for i in range(len(samp_neighs)) for _ in range(len(samp_neighs[i]))]
    mask_ref[rows, cols] = 1.0
    emb_ref = np.asarray(features)[np.asarray(unique_nodes_list, dtype=np.int64)]
    ref = mask_ref @ emb_ref

    # bf16-rounded embeddings -> relaxed tolerance on the sum of <=10 neighbors.
    np.testing.assert_allclose(np.asarray(to_feats), ref, rtol=2e-2, atol=1.5e-1)

    # Also exercise the multi-K accumulation kernel directly (forced small
    # tiles so the K grid axis has 2 steps and the M axis has 2 parallel steps).
    Mp2, Kp2, Dp2 = 64, 256, 128
    mask2 = (jax.random.uniform(k_mask, (Mp2, Kp2)) < 0.1).astype(jnp.int8)
    emb2 = jax.random.normal(k_emb, (Kp2, Dp2), dtype=jnp.float32).astype(jnp.bfloat16)
    out2 = pallas_mask_mm(mask2, emb2, tm=32, tk=128, emb_buffers=2,
                          vmem_limit_bytes=_vmem_limit_bytes())
    out2 = jax.block_until_ready(out2)
    ref2 = np.asarray(mask2, dtype=np.float32) @ np.asarray(emb2, dtype=np.float32)
    np.testing.assert_allclose(np.asarray(out2), ref2, rtol=2e-2, atol=2e-1)

    print("KERNEL_OK")
</pallas_src>

<mosaic_0001>
module attributes {stable_mosaic.version = 11 : i64} {
  func.func @_mm_single_k_kernel(%arg0: i32, %arg1: memref<32x128xi8, #tpu.memory_space<vmem>>, %arg2: memref<128x128xbf16, #tpu.memory_space<vmem>>, %arg3: memref<32x128xf32, #tpu.memory_space<vmem>>) attributes {dimension_semantics = [#tpu.dimension_semantics<parallel>], iteration_bounds = array<i64: 1>, scalar_prefetch = 0 : i64, scratch_operands = 0 : i64, tpu.core_type = #tpu.core_type<tc>, window_params = [{transform_indices = @transform_0, window_bounds = array<i64: 32, 128>}, {pipeline_mode = #tpu.pipeline_mode<synchronous>, transform_indices = @transform_1, window_bounds = array<i64: 128, 128>}, {transform_indices = @transform_2, window_bounds = array<i64: 32, 128>}]} {
    %c0 = arith.constant 0 : index
    %c0_0 = arith.constant 0 : index
    %0 = vector.load %arg1[%c0, %c0_0] : memref<32x128xi8, #tpu.memory_space<vmem>>, vector<32x128xi8>
    %1 = arith.sitofp %0 : vector<32x128xi8> to vector<32x128xbf16>
    %c0_1 = arith.constant 0 : index
    %c0_2 = arith.constant 0 : index
    %2 = vector.load %arg2[%c0_1, %c0_2] : memref<128x128xbf16, #tpu.memory_space<vmem>>, vector<128x128xbf16>
    %cst = arith.constant dense<0.000000e+00> : vector<32x128xf32>
    %3 = tpu.matmul %1, %2, %cst {dimension_numbers = #tpu.dot_dimension_numbers<[1], [0], [0], [1], [0, 0, 1, 1], [], []>} : vector<32x128xbf16>, vector<128x128xbf16>, vector<32x128xf32> -> vector<32x128xf32>
    %c0_3 = arith.constant 0 : index
    %c0_4 = arith.constant 0 : index
    %4 = vector.load %arg3[%c0_3, %c0_4] : memref<32x128xf32, #tpu.memory_space<vmem>>, vector<32x128xf32>
    tpu.vector_store %arg3[%c0_3, %c0_4], %3 {strides = array<i32>} : memref<32x128xf32, #tpu.memory_space<vmem>>, vector<32x128xf32>,
    return
  }
  func.func @transform_0(%arg0: i32) -> (i32, i32) {
    %c0_i32 = arith.constant 0 : i32
    %c0_i32_0 = arith.constant 0 : i32
    return %arg0, %c0_i32 : i32, i32
  }
  func.func @transform_1(%arg0: i32) -> (i32, i32) {
    %c0_i32 = arith.constant 0 : i32
    %c0_i32_0 = arith.constant 0 : i32
    %c0_i32_1 = arith.constant 0 : i32
    return %c0_i32, %c0_i32_0 : i32, i32
  }
  func.func @transform_2(%arg0: i32) -> (i32, i32) {
    %c0_i32 = arith.constant 0 : i32
    %c0_i32_0 = arith.constant 0 : i32
    return %arg0, %c0_i32 : i32, i32
  }
}

</mosaic_0001>

<llo_original>
// kernel: tpu_custom_call.1
$region0: #{tpu_custom_call.1}
  #allocation0 [shape = 'u32[]', space=smem, size = 0x4, offset = 0x4, fixed_abs, tag = 'smem constant byte address 0x4 - core index']
  #allocation1 [shape = 'u32[144,128]{1,0:T(1,128)}', space=vmem, size = 0x12000, scoped, tag = 'internal scratch']
  %s0 = inlined_call_operand.hbm [shape: s8[32,128], index: 0, kind: input, shape index: {}]
  %s1 = inlined_call_operand.hbm [shape: bf16[128,128], index: 1, kind: input, shape index: {}]
  %s2 = inlined_call_operand.hbm [shape: f32[32,128], index: 2, kind: output, shape index: {}]
  %s3 = sld [smem:[#allocation0]]
  $region26: #{tpu_custom_call.1} parent=0
    _
  %s5 = ssub.s32 1, %s3
  %s6 = scalar_select 0, %s5, %s3
  $region1: #{tpu_custom_call.1} parent=0
    #allocation2 [shape = 'u8[4096]{0}', space=vmem, size = 0x1000, scoped, tag = 'input window, operand 0, single buffered']
    #allocation3 [shape = 's32[1]{0}', space=sflag, size = 0x4, scoped, tag = 'scoped memory for tpu_custom_call.1']
    #allocation4 [shape = 's32[1]{0}', space=sflag, size = 0x4, scoped, tag = 'scoped memory for tpu_custom_call.1']
    #allocation5 [shape = 'u8[32768]{0}', space=vmem, size = 0x8000, scoped, tag = 'input window, operand 1, single buffered']
    #allocation6 [shape = 's32[1]{0}', space=sflag, size = 0x4, scoped, tag = 'scoped memory for tpu_custom_call.1']
    #allocation7 [shape = 'u8[16384]{0}', space=vmem, size = 0x4000, scoped, tag = 'output window, operand 0, single buffered']
    %7 = vsyncpa [#allocation3], 0
    %8 = vsyncpa [#allocation6], 0
    %9 = vsyncpa [#allocation4], 0
    // Predicated region
    $region2: #{tpu_custom_call.1} parent=1 // pred_check
      _
    $region3: #{tpu_custom_call.1} parent=1 // pred_check_branch
      %11 = sbr.rel (0) target = $region5
    $region4: #{tpu_custom_call.1} parent=1 // pred_region
      %s13 = ssub.s32 128, 128
      %14 = vsyncadd [#allocation3], %s13
      %s16 = sshll.u32 [#allocation2], 4
      %s17 = int_to_ptr.vmem [resolvable:$true] %s16
      %19 = dma.hbm_to_vmem [thread:$0]  %s0, 128, %s17, [#allocation3]
    $region5: #{tpu_custom_call.1} parent=1 // pred_fallthru
      _
    // Predicated region
    $region6: #{tpu_custom_call.1} parent=1 // pred_check
      _
    $region7: #{tpu_custom_call.1} parent=1 // pred_check_branch
      %21 = sbr.rel (0) target = $region9
    $region8: #{tpu_custom_call.1} parent=1 // pred_region
      %s23 = ssub.s32 1024, 1024
      %24 = vsyncadd [#allocation6], %s23
      %s25 = sshll.u32 [#allocation5], 4
      %s26 = int_to_ptr.vmem [resolvable:$true] %s25
      %31 = dma.hbm_to_vmem [thread:$0]  %s1, 1024, %s26, [#allocation6], 64, 64, 4
    $region9: #{tpu_custom_call.1} parent=1 // pred_fallthru
      _
    // Predicated region
    $region10: #{tpu_custom_call.1} parent=1 // pred_check
      _
    $region11: #{tpu_custom_call.1} parent=1 // pred_check_branch
      %33 = sbr.rel (0) target = $region13
    $region12: #{tpu_custom_call.1} parent=1 // pred_region
      %34 = dma.done [#allocation3], 128
    $region13: #{tpu_custom_call.1} parent=1 // pred_fallthru
      _
    // Predicated region
    $region14: #{tpu_custom_call.1} parent=1 // pred_check
      _
    $region15: #{tpu_custom_call.1} parent=1 // pred_check_branch
      %36 = sbr.rel (0) target = $region17
    $region16: #{tpu_custom_call.1} parent=1 // pred_region
      %37 = dma.done [#allocation6], 1024
    $region17: #{tpu_custom_call.1} parent=1 // pred_fallthru
      _
    %v39 = vld [vmem:[#allocation2] sm:$0xff]
    %v40 = vunpack.c.l.s8.bf16 %v39
    %v41 = vunpack.c.h.s8.bf16 %v39
    %v42 = vld [vmem:[#allocation5] sm:$0xf]
    %v43 = vld [vmem:[#allocation5 + $0x4] sm:$0xf]
    %v44 = vld [vmem:[#allocation5 + $0x8] sm:$0xf]
    %v45 = vld [vmem:[#allocation5 + $0xc] sm:$0xf]
    %v46 = vld [vmem:[#allocation5 + $0x10] sm:$0xf]
    %v47 = vld [vmem:[#allocation5 + $0x14] sm:$0xf]
    %v48 = vld [vmem:[#allocation5 + $0x18] sm:$0xf]
    %v49 = vld [vmem:[#allocation5 + $0x1c] sm:$0xf]
    %v50 = vld [vmem:[#allocation5 + $0x20] sm:$0xf]
    %v51 = vld [vmem:[#allocation5 + $0x24] sm:$0xf]
    %v52 = vld [vmem:[#allocation5 + $0x28] sm:$0xf]
    %v53 = vld [vmem:[#allocation5 + $0x2c] sm:$0xf]
    %v54 = vld [vmem:[#allocation5 + $0x30] sm:$0xf]
    %v55 = vld [vmem:[#allocation5 + $0x34] sm:$0xf]
    %v56 = vld [vmem:[#allocation5 + $0x38] sm:$0xf]
    %v57 = vld [vmem:[#allocation5 + $0x3c] sm:$0xf]
    %v74 = vunpack.c.l.b16 %v42
    %v75 = vunpack.c.l.b16 %v43
    %v76 = vunpack.c.l.b16 %v44
    %v77 = vunpack.c.l.b16 %v45
    %v78 = vunpack.c.l.b16 %v46
    %v79 = vunpack.c.l.b16 %v47
    %v80 = vunpack.c.l.b16 %v48
    %v81 = vunpack.c.l.b16 %v49
    %v82 = vunpack.c.l.b16 %v50
    %v83 = vunpack.c.l.b16 %v51
    %v84 = vunpack.c.l.b16 %v52
    %v85 = vunpack.c.l.b16 %v53
    %v86 = vunpack.c.l.b16 %v54
    %v87 = vunpack.c.l.b16 %v55
    %v88 = vunpack.c.l.b16 %v56
    %v89 = vunpack.c.l.b16 %v57
    %v90 = vpack.c.b16 %v75, %v74
    %v91 = vpack.c.b16 %v77, %v76
    %v92 = vpack.c.b16 %v79, %v78
    %v93 = vpack.c.b16 %v81, %v80
    %v94 = vpack.c.b16 %v83, %v82
    %v95 = vpack.c.b16 %v85, %v84
    %v96 = vpack.c.b16 %v87, %v86
    %v97 = vpack.c.b16 %v89, %v88
    %106 = vmatprep.subr.bf16.mxu0 0
    %107 = vmatpush1.bf16.msra.mxu0 %v90
    %108 = vmatprep.subr.bf16.mxu0 0
    %109 = vmatpush1.bf16.msra.mxu0 %v91
    %110 = vmatprep.subr.bf16.mxu0 0
    %111 = vmatpush1.bf16.msra.mxu0 %v92
    %112 = vmatprep.subr.bf16.mxu0 0
    %113 = vmatpush1.bf16.msra.mxu0 %v93
    %114 = vmatprep.subr.bf16.mxu0 0
    %115 = vmatpush1.bf16.msra.mxu0 %v94
    %116 = vmatprep.subr.bf16.mxu0 0
    %117 = vmatpush1.bf16.msra.mxu0 %v95
    %118 = vmatprep.subr.bf16.mxu0 0
    %119 = vmatpush1.bf16.msra.mxu0 %v96
    %120 = vmatprep.subr.bf16.mxu0 0
    %121 = vmatpush1.bf16.msra.mxu0 %v97
    %122 = vmatprep.subr.bf16.mxu0 0
    %123 = vmatpush1.bf16.msra.mxu0 0
    %124 = vmatprep.subr.bf16.mxu0 0
    %125 = vmatpush1.bf16.msra.mxu0 0
    %126 = vmatprep.subr.bf16.mxu0 0
    %127 = vmatpush1.bf16.msra.mxu0 0
    %128 = vmatprep.subr.bf16.mxu0 0
    %129 = vmatpush1.bf16.msra.mxu0 0
    %130 = vmatprep.subr.bf16.mxu0 0
    %131 = vmatpush1.bf16.msra.mxu0 0
    %132 = vmatprep.subr.bf16.mxu0 0
    %133 = vmatpush1.bf16.msra.mxu0 0
    %134 = vmatprep.subr.bf16.mxu0 0
    %135 = vmatpush1.bf16.msra.mxu0 0
    %136 = vmatprep.subr.bf16.mxu0 0
    %137 = vmatpush1.bf16.msra.mxu0 0
    %138 = vmatprep.mubr.bf16.mxu0 0
    %139 = vmatmul.mubr.bf16.gmra.mrb[0].mxu0 %v40
    %v140 = vpop.f32.mrb[0].mxu0
    %v141 = vadd.f32 0.0, %v140
    %v142 = vpop.f32.mrb[0].mxu0
    %v143 = vpop.f32.mrb[0].mxu0
    %v144 = vadd.f32 0.0, %v143
    %v145 = vpop.f32.mrb[0].mxu0
    %146 = vmatprep.mubr.bf16.mxu0 0
    %147 = vmatmul.mubr.bf16.gmra.mrb[0].mxu0 %v41
    %v148 = vpop.f32.mrb[0].mxu0
    %v149 = vadd.f32 0.0, %v148
    %v150 = vpop.f32.mrb[0].mxu0
    %v151 = vpop.f32.mrb[0].mxu0
    %v152 = vadd.f32 0.0, %v151
    %v153 = vpop.f32.mrb[0].mxu0
    %154 = vdwg.mxu0
    %155 = vst [vmem:[#allocation7] sm:$0xff] %v141
    %156 = vst [vmem:[#allocation7 + $0x8] sm:$0xff] %v144
    %157 = vst [vmem:[#allocation7 + $0x10] sm:$0xff] %v149
    %158 = vst [vmem:[#allocation7 + $0x18] sm:$0xff] %v152
    // Predicated region
    $region18: #{tpu_custom_call.1} parent=1 // pred_check
      _
    $region19: #{tpu_custom_call.1} parent=1 // pred_check_branch
      %160 = sbr.rel (0) target = $region21
    $region20: #{tpu_custom_call.1} parent=1 // pred_region
      %s162 = ssub.s32 512, 512
      %163 = vsyncadd [#allocation4], %s162
      %s164 = sshll.u32 [#allocation7], 4
      %s165 = int_to_ptr.vmem [resolvable:$true] %s164
      %170 = dma.vmem_to_hbm [thread:$0]  %s165, 512, %s2, [#allocation4], 128, 128, 8
    $region21: #{tpu_custom_call.1} parent=1 // pred_fallthru
      _
    // Predicated region
    $region22: #{tpu_custom_call.1} parent=1 // pred_check
      _
    $region23: #{tpu_custom_call.1} parent=1 // pred_check_branch
      %172 = sbr.rel (0) target = $region25
    $region24: #{tpu_custom_call.1} parent=1 // pred_region
      %173 = dma.done [#allocation4], 512
    $region25: #{tpu_custom_call.1} parent=1 // pred_fallthru
      _
    %174 = vsyncpa [#allocation3], 1
    %175 = vsyncpa [#allocation6], 1
    %176 = vsyncpa [#allocation4], 1

</llo_original>
